<compile_context>
chip_gen: v7x
topology: tpu7x:2x2x1
jax: 0.10.0
libtpu: 0.0.40
codegen_flags: <defaults>
</compile_context>

<pallas_src>
import functools
import math

import jax
import jax.numpy as jnp
from jax import lax
from jax.experimental import pallas as pl
from jax.experimental.pallas import tpu as pltpu


def _round_up(x, m):
    return ((x + m - 1) // m) * m


# ---------------------------------------------------------------------------
# Kernel A: loop-invariant low-capsule projection  low_new = low @ S
# ---------------------------------------------------------------------------
def _project_kernel(low_ref, s_ref, out_ref):
    nn, tp, d = low_ref.shape
    # leading-dim merge only (minor dim untouched) -> cheap, Mosaic-safe
    x = low_ref[...].reshape(nn * tp, d)
    y = jnp.dot(x, s_ref[...], preferred_element_type=jnp.float32)
    out_ref[...] = y.astype(out_ref.dtype).reshape(nn, tp, y.shape[-1])


def project_low_capsules(mail_user_bf16, s_matrix_bf16, *, tile_p=1024):
    E, L, U, D = mail_user_bf16.shape
    Do = s_matrix_bf16.shape[1]
    tile = min(_round_up(tile_p, 8), _round_up(U, 8))
    return pl.pallas_call(
        _project_kernel,
        grid=(E, pl.cdiv(U, tile)),
        in_specs=[pl.BlockSpec((None, L, tile, D), lambda e, i: (e, 0, i, 0)),
                  pl.BlockSpec((D, Do), lambda e, i: (0, 0))],
        out_specs=pl.BlockSpec((None, L, tile, Do), lambda e, i: (e, 0, i, 0)),
        out_shape=jax.ShapeDtypeStruct((E, L, U, Do), jnp.bfloat16),
        compiler_params=pltpu.CompilerParams(
            dimension_semantics=("parallel", "parallel"),
            vmem_limit_bytes=32 * 1024 * 1024),
    )(mail_user_bf16, s_matrix_bf16)


# ---------------------------------------------------------------------------
# Kernel B: fused dynamic-routing over the three flag==0 edge types
#   grid = (edge_type, iteration, user_tile); B is a resident accumulator.
# ---------------------------------------------------------------------------
def _routing_kernel(b0_ref, low_ref, high_ref, b_ref, w_scr, *,
                    dim_out, n_valid, tile_b):
    e = pl.program_id(0)
    it = pl.program_id(1)
    bt = pl.program_id(2)

    # Initialize the persistent routing logits from the B_matrix slice once.
    @pl.when((e == 0) & (it == 0) & (bt == 0))
    def _init_b():
        b_ref[...] = b0_ref[...]

    # W = softmax(B) is batch-independent: snapshot once per (edge, iteration)
    # BEFORE any of this iteration's deltas are accumulated into B.  (Padded
    # routing columns beyond num_nei provably receive zero delta and ~zero
    # softmax weight in the reference, so only the :num_nei slice is carried.)
    @pl.when(bt == 0)
    def _snapshot_w():
        w_scr[...] = jax.nn.softmax(b_ref[...], axis=-1)

    low = low_ref[...]                                # (num_nei, tile_b*dim_out) bf16
    if n_valid % tile_b != 0:
        # ragged user tail: zero the out-of-range columns (keeps B_delta exact
        # without a host-side full-tensor jnp.pad copy of the mailbox).
        u_idx = lax.broadcasted_iota(jnp.int32, low.shape, 1) // dim_out
        limit = n_valid - bt * tile_b
        low = jnp.where(u_idx < limit, low, jnp.zeros_like(low))

    w = w_scr[...].astype(jnp.bfloat16)               # (K_c, num_nei)

    # high_tmp = W @ low_new : bf16 MXU operands, f32 accumulation.
    high_tmp = jnp.dot(w, low, preferred_element_type=jnp.float32)

    # squash: the reference reduces over dim=1 of (B, K_c, dim_out) == the
    # capsule axis; here that is axis 0 of (K_c, tile_b*dim_out).  f32 VPU.
    sqn = jnp.sum(high_tmp * high_tmp, axis=0, keepdims=True)
    sf = sqn / (1.0 + sqn) * lax.rsqrt(sqn + 1e-9)
    high_bf = (sf * high_tmp).astype(jnp.bfloat16)

    # B_delta = sum_b high @ low_new^T : single bf16 contraction over the
    # flattened (user, feature) axis, f32 accumulate into the resident B.
    b_delta = lax.dot_general(high_bf, low,
                              dimension_numbers=(((1,), (1,)), ((), ())),
                              preferred_element_type=jnp.float32)
    b_ref[...] += b_delta
    high_ref[...] = high_bf


def capsule_routing(low_new_flat, b_init, *, iteration, k_c, num_nei, dim_out,
                    n_users, tile_b):
    E = low_new_flat.shape[0]
    n_bt = pl.cdiv(n_users, tile_b)
    # one extra "sink" tile: non-final iterations write there (resident block),
    # so only the final iteration's high ever reaches HBM.
    h_cols = (n_bt + 1) * tile_b * dim_out

    def low_map(e, it, bt):
        return (e, 0, bt)

    def high_map(e, it, bt):
        last = (it + 1) // iteration          # 1 iff final routing iteration
        return (e, 0, bt * last + n_bt * (1 - last))

    flops = 4 * E * iteration * k_c * num_nei * n_users * dim_out
    bytes_acc = E * (iteration * num_nei * n_users * dim_out * 2   # low re-reads
                     + k_c * n_users * dim_out * 2                 # final high write
                     + iteration * k_c * num_nei * 4 * 2)          # B traffic

    kern = functools.partial(_routing_kernel, dim_out=dim_out,
                             n_valid=n_users, tile_b=tile_b)
    return pl.pallas_call(
        kern,
        grid=(E, iteration, n_bt),
        in_specs=[
            pl.BlockSpec((k_c, num_nei), lambda e, it, bt: (0, 0)),
            pl.BlockSpec((None, num_nei, tile_b * dim_out), low_map),
        ],
        out_specs=(
            pl.BlockSpec((None, k_c, tile_b * dim_out), high_map),
            pl.BlockSpec((k_c, num_nei), lambda e, it, bt: (0, 0)),
        ),
        out_shape=(jax.ShapeDtypeStruct((E, k_c, h_cols), jnp.bfloat16),
                   jax.ShapeDtypeStruct((k_c, num_nei), jnp.float32)),
        scratch_shapes=[pltpu.VMEM((k_c, num_nei), jnp.float32)],
        compiler_params=pltpu.CompilerParams(
            # B is one shared resident accumulator mutated sequentially across
            # edge types / iterations (torch in-place semantics) -> keep all
            # axes "arbitrary" (single core).  TODO(synk): a v7x 2-core split
            # would need per-core partial-B outputs combined per iteration.
            dimension_semantics=("arbitrary", "arbitrary", "arbitrary"),
            vmem_limit_bytes=32 * 1024 * 1024),
        cost_estimate=pl.CostEstimate(
            flops=flops,
            transcendentals=E * iteration * (k_c * num_nei + n_users * dim_out),
            bytes_accessed=bytes_acc),
    )(b_init, low_new_flat)


# ---------------------------------------------------------------------------
# Kernel C: mean reducer (flag == 1 / flag == 2), neighbor-major mailbox
# ---------------------------------------------------------------------------
def _mean_kernel(mail_ref, out_ref):
    out_ref[...] = jnp.mean(mail_ref[...].astype(jnp.float32), axis=0)


def mean_reduce(mailbox_nm, *, tile_n=4096):
    L, N, D = mailbox_nm.shape
    tile = min(_round_up(tile_n, 8), _round_up(N, 8))
    return pl.pallas_call(
        _mean_kernel,
        grid=(pl.cdiv(N, tile),),
        in_specs=[pl.BlockSpec((L, tile, D), lambda i: (0, i, 0))],
        out_specs=pl.BlockSpec((tile, D), lambda i: (i, 0)),
        out_shape=jax.ShapeDtypeStruct((N, D), jnp.float32),
        compiler_params=pltpu.CompilerParams(
            dimension_semantics=("parallel",),
            vmem_limit_bytes=32 * 1024 * 1024),
    )(mailbox_nm)


# ---------------------------------------------------------------------------
# Kernel D: lane-dense user attention over the 3*max_K capsules
# ---------------------------------------------------------------------------
def _user_attn_kernel(x_ref, m1_ref, m2_ref, out_ref, *, gamma, k2, d):
    x = x_ref[...]                                               # (TU, K2*D) bf16
    # logits via block-diagonal kron(I_K2, M1): one dense bf16 MXU matmul.
    t = jnp.tanh(jnp.dot(x, m1_ref[...],
                         preferred_element_type=jnp.float32))    # (TU, K2*H) f32
    a1 = jnp.dot(t.astype(jnp.bfloat16), m2_ref[...],
                 preferred_element_type=jnp.float32)             # (TU, K2) f32
    if gamma != 1:                                               # torch.pow
        a1 = a1 ** gamma
    att = jax.nn.softmax(a1, axis=-1)                            # f32
    acc = jnp.zeros((x.shape[0], d), jnp.float32)
    for j in range(k2):                                          # static K2=12 loop
        acc = acc + att[:, j:j + 1] * x[:, j * d:(j + 1) * d].astype(jnp.float32)
    out_ref[...] = acc


def user_attention(user_all_flat, M1, M2, *, gamma, dim_out, tile_u=2048):
    U, W = user_all_flat.shape
    D = dim_out
    K2 = W // D
    H = M1.shape[1]
    m1_bd = jnp.kron(jnp.eye(K2, dtype=jnp.float32),
                     M1.astype(jnp.float32)).astype(jnp.bfloat16)   # (K2*D, K2*H)
    m2_bd = jnp.kron(jnp.eye(K2, dtype=jnp.float32),
                     M2.astype(jnp.float32).reshape(H, 1)
                     ).astype(jnp.bfloat16)                         # (K2*H, K2)
    tile = min(_round_up(tile_u, 8), _round_up(U, 8))
    kern = functools.partial(_user_attn_kernel, gamma=gamma, k2=K2, d=D)
    return pl.pallas_call(
        kern,
        grid=(pl.cdiv(U, tile),),
        in_specs=[pl.BlockSpec((tile, K2 * D), lambda i: (i, 0)),
                  pl.BlockSpec((K2 * D, K2 * H), lambda i: (0, 0)),
                  pl.BlockSpec((K2 * H, K2), lambda i: (0, 0))],
        out_specs=pl.BlockSpec((tile, D), lambda i: (i, 0)),
        out_shape=jax.ShapeDtypeStruct((U, D), jnp.float32),
        compiler_params=pltpu.CompilerParams(
            dimension_semantics=("parallel",),
            vmem_limit_bytes=32 * 1024 * 1024),
    )(user_all_flat, m1_bd, m2_bd)


# ---------------------------------------------------------------------------
# Forward wrapper (mirrors M2GNN_one.forward)
# ---------------------------------------------------------------------------
def m2gnn_one_forward(idx_layer, *, n_hops, max_K, max_len, iteration, gamma,
                      mail_user, mail_review, mail_tag,
                      tag_embed_res, B_matrix, S_matrix, M1, M2,
                      tile_b=2048, tile_p=1024, tile_n=4096, tile_u=2048):
    """mail_user:   (3, num_nei, n_users, dim) stacked low capsules for the
                    three flag==0 edge types (u_r_t, u_q_t, u_p_r_t),
                    neighbor-major, fixed degree num_nei.
       mail_review: (num_nei, n_reviews, dim)   r_h_t mailbox (flag==2).
       mail_tag:    (num_nei, n_tags, dim)      t2t  mailbox (flag==1).
    Returns (user_embed, review_embed, tag_embed, B_matrix_updated); the last
    entry carries torch's in-place B_matrix "+=" across hops."""
    n_edge, num_nei, n_users, dim = mail_user.shape
    dim_out = S_matrix.shape[1]
    K_c = max(1, min(max_K, int(math.log2(num_nei))))

    # routing tile: tile*dim_out must be a multiple of 128 lanes (dense vst).
    lane_align = max(8, 128 // math.gcd(dim_out, 128))
    tile = min(_round_up(tile_b, lane_align), _round_up(n_users, lane_align))

    low_bf = mail_user.astype(jnp.bfloat16)

    # --- loop-invariant S projection (Kernel A) ------------------------------
    low_new = project_low_capsules(low_bf, S_matrix.astype(jnp.bfloat16),
                                   tile_p=tile_p)
    # TODO(synk): this reshape to the lane-dense routing layout is a one-off
    # XLA retiling copy; folding it into the projection kernel needs a
    # minor-dim-merging in-kernel reshape that Mosaic may reject, so it stays
    # on the host for robustness (upstream gathers should ideally emit flat).
    low_new_flat = low_new.reshape(n_edge, num_nei, n_users * dim_out)

    # --- capsule routing over the three user edge types (flag == 0) ---------
    b_init = B_matrix[0, :K_c, :num_nei].astype(jnp.float32)
    high_flat, b_final = capsule_routing(
        low_new_flat, b_init, iteration=iteration, k_c=K_c, num_nei=num_nei,
        dim_out=dim_out, n_users=n_users, tile_b=tile)

    # bf16 host glue: drop the dummy sink tile, pad K_c -> max_K (torch F.pad)
    # and lay out user-major as cat([u_r_t, u_q_t, u_p_r_t], dim=1).
    high = high_flat[:, :, :n_users * dim_out].reshape(
        n_edge, K_c, n_users, dim_out)
    high = jnp.pad(high, ((0, 0), (0, max_K - K_c), (0, 0), (0, 0)))
    user_all_flat = jnp.transpose(high, (2, 0, 1, 3)).reshape(
        n_users, n_edge * max_K * dim_out)

    # --- mean reducers (flag == 2 / flag == 1) -------------------------------
    review_embed = mean_reduce(mail_review.astype(jnp.bfloat16), tile_n=tile_n)
    if idx_layer < n_hops - 1:
        tag_embed_out = mean_reduce(mail_tag.astype(jnp.bfloat16), tile_n=tile_n)
    else:
        tag_embed_out = tag_embed_res

    # --- user attention fusion (Kernel D) ------------------------------------
    user_embed = user_attention(user_all_flat, M1, M2, gamma=gamma,
                                dim_out=dim_out, tile_u=tile_u)

    B_matrix_new = B_matrix.astype(jnp.float32).at[0, :K_c, :num_nei].set(b_final)
    return user_embed, review_embed, tag_embed_out, B_matrix_new


if __name__ == "__main__":
    # small, module-consistent shapes
    n_users, n_reviews, n_tags = 8, 8, 8
    n_hops, dim, iteration, max_K, max_len, gamma = 2, 32, 3, 4, 16, 1
    num_nei = 8                                  # fixed neighbor degree
    idx_layer = 0

    key = jax.random.PRNGKey(0)
    ks = jax.random.split(key, 12)
    user_embed_res = jax.random.normal(ks[0], (n_users, dim), jnp.float32)
    review_embed_res = jax.random.normal(ks[1], (n_reviews, dim), jnp.float32)
    tag_embed_res = jax.random.normal(ks[2], (n_tags, dim), jnp.float32)

    B_matrix = jnp.zeros((1, max_K, max_len), jnp.float32)
    S_matrix = 0.1 * jax.random.normal(ks[3], (dim, dim), jnp.float32)
    M1 = 0.1 * jax.random.normal(ks[4], (dim, dim), jnp.float32)
    M2 = 0.1 * jax.random.normal(ks[5], (dim, 1), jnp.float32)

    # TODO(synk): the DGL heterograph update_all(copy_u(...)) has no Pallas
    # equivalent; the graph is modeled as fixed-degree neighbor index tables
    # and the mailboxes are dense neighbor-major gathers (plain-JAX glue)
    # feeding the Pallas reducers.
    idx_urt = jax.random.randint(ks[6], (n_users, num_nei), 0, n_tags)
    idx_uqt = jax.random.randint(ks[7], (n_users, num_nei), 0, n_tags)
    idx_uprt = jax.random.randint(ks[8], (n_users, num_nei), 0, n_reviews)
    idx_rht = jax.random.randint(ks[9], (n_reviews, num_nei), 0, n_tags)
    idx_t2t = jax.random.randint(ks[10], (n_tags, num_nei), 0, n_tags)

    tag_bf16 = tag_embed_res.astype(jnp.bfloat16)
    rev_bf16 = review_embed_res.astype(jnp.bfloat16)
    mail_urt = tag_bf16[idx_urt.T]               # (num_nei, n_users, dim)
    mail_uqt = tag_bf16[idx_uqt.T]
    mail_uprt = rev_bf16[idx_uprt.T]
    mail_user = jnp.stack([mail_urt, mail_uqt, mail_uprt], axis=0)
    mail_review = tag_bf16[idx_rht.T]            # (num_nei, n_reviews, dim)
    mail_tag = tag_bf16[idx_t2t.T]               # (num_nei, n_tags, dim)

    out = m2gnn_one_forward(
        idx_layer, n_hops=n_hops, max_K=max_K, max_len=max_len,
        iteration=iteration, gamma=gamma,
        mail_user=mail_user, mail_review=mail_review, mail_tag=mail_tag,
        tag_embed_res=tag_embed_res, B_matrix=B_matrix, S_matrix=S_matrix,
        M1=M1, M2=M2)
    jax.block_until_ready(out)
    assert out[0].shape == (n_users, dim)
    assert out[1].shape == (n_reviews, dim)
    assert out[2].shape == (n_tags, dim)
    assert out[3].shape == (1, max_K, max_len)
    print("KERNEL_OK")
</pallas_src>

<mosaic_0001>
module attributes {stable_mosaic.version = 11 : i64} {
  func.func @_project_kernel(%arg0: i32, %arg1: i32, %arg2: memref<1x8x8x32xbf16, #tpu.memory_space<vmem>>, %arg3: memref<32x32xbf16, #tpu.memory_space<vmem>>, %arg4: memref<1x8x8x32xbf16, #tpu.memory_space<vmem>>) attributes {dimension_semantics = [#tpu.dimension_semantics<parallel>, #tpu.dimension_semantics<parallel>], iteration_bounds = array<i64: 3, 1>, scalar_prefetch = 0 : i64, scratch_operands = 0 : i64, tpu.core_type = #tpu.core_type<tc>, window_params = [{transform_indices = @transform_0, window_bounds = array<i64: 1, 8, 8, 32>}, {pipeline_mode = #tpu.pipeline_mode<synchronous>, transform_indices = @transform_1, window_bounds = array<i64: 32, 32>}, {transform_indices = @transform_2, window_bounds = array<i64: 1, 8, 8, 32>}]} {
    %c0 = arith.constant 0 : index
    %c0_0 = arith.constant 0 : index
    %c0_1 = arith.constant 0 : index
    %c0_2 = arith.constant 0 : index
    %0 = vector.load %arg2[%c0, %c0_0, %c0_1, %c0_2] : memref<1x8x8x32xbf16, #tpu.memory_space<vmem>>, vector<1x8x8x32xbf16>
    %1 = vector.shape_cast %0 : vector<1x8x8x32xbf16> to vector<8x8x32xbf16>
    %2 = vector.shape_cast %1 : vector<8x8x32xbf16> to vector<64x32xbf16>
    %c0_3 = arith.constant 0 : index
    %c0_4 = arith.constant 0 : index
    %3 = vector.load %arg3[%c0_3, %c0_4] : memref<32x32xbf16, #tpu.memory_space<vmem>>, vector<32x32xbf16>
    %cst = arith.constant dense<0.000000e+00> : vector<64x32xf32>
    %4 = tpu.matmul %2, %3, %cst {dimension_numbers = #tpu.dot_dimension_numbers<[1], [0], [0], [1], [0, 0, 1, 1], [], []>} : vector<64x32xbf16>, vector<32x32xbf16>, vector<64x32xf32> -> vector<64x32xf32>
    %5 = arith.truncf %4 : vector<64x32xf32> to vector<64x32xbf16>
    %6 = vector.shape_cast %5 : vector<64x32xbf16> to vector<8x8x32xbf16>
    %c0_5 = arith.constant 0 : index
    %c0_6 = arith.constant 0 : index
    %c0_7 = arith.constant 0 : index
    %c0_8 = arith.constant 0 : index
    %7 = vector.load %arg4[%c0_5, %c0_6, %c0_7, %c0_8] : memref<1x8x8x32xbf16, #tpu.memory_space<vmem>>, vector<1x8x8x32xbf16>
    %8 = vector.shape_cast %7 : vector<1x8x8x32xbf16> to vector<8x8x32xbf16>
    %9 = vector.shape_cast %6 : vector<8x8x32xbf16> to vector<1x8x8x32xbf16>
    tpu.vector_store %arg4[%c0_5, %c0_6, %c0_7, %c0_8], %9 {strides = array<i32>} : memref<1x8x8x32xbf16, #tpu.memory_space<vmem>>, vector<1x8x8x32xbf16>,
    return
  }
  func.func @transform_0(%arg0: i32, %arg1: i32) -> (i32, i32, i32, i32) {
    %c0_i32 = arith.constant 0 : i32
    %c0_i32_0 = arith.constant 0 : i32
    %c0_i32_1 = arith.constant 0 : i32
    return %arg0, %c0_i32, %arg1, %c0_i32_0 : i32, i32, i32, i32
  }
  func.func @transform_1(%arg0: i32, %arg1: i32) -> (i32, i32) {
    %c0_i32 = arith.constant 0 : i32
    %c0_i32_0 = arith.constant 0 : i32
    %c0_i32_1 = arith.constant 0 : i32
    return %c0_i32, %c0_i32_0 : i32, i32
  }
  func.func @transform_2(%arg0: i32, %arg1: i32) -> (i32, i32, i32, i32) {
    %c0_i32 = arith.constant 0 : i32
    %c0_i32_0 = arith.constant 0 : i32
    %c0_i32_1 = arith.constant 0 : i32
    return %arg0, %c0_i32, %arg1, %c0_i32_0 : i32, i32, i32, i32
  }
}

</mosaic_0001>

<llo_original>
// kernel: tpu_custom_call.1
$region0: #{tpu_custom_call.1}
  #allocation0 [shape = 'u32[]', space=smem, size = 0x4, offset = 0x4, fixed_abs, tag = 'smem constant byte address 0x4 - core index']
  #allocation1 [shape = 'u32[144,128]{1,0:T(1,128)}', space=vmem, size = 0x12000, scoped, tag = 'internal scratch']
  %s0 = inlined_call_operand.hbm [shape: bf16[3,8,8,32], index: 0, kind: input, shape index: {}]
  %s1 = inlined_call_operand.hbm [shape: bf16[32,32], index: 1, kind: input, shape index: {}]
  %s2 = inlined_call_operand.hbm [shape: bf16[3,8,8,32], index: 2, kind: output, shape index: {}]
  %s3 = sld [smem:[#allocation0]]
  $region49: #{tpu_custom_call.1} parent=0
    _
  %s5 = ssub.s32 1, %s3
  %s6 = scalar_select 0, %s5, %s3
  $region1: #{tpu_custom_call.1} parent=0
    #allocation2 [shape = 'u8[32768]{0}', space=vmem, size = 0x8000, scoped, tag = 'input window, operand 0']
    #allocation3 [shape = 's32[2]{0}', space=sflag, size = 0x8, scoped, tag = 'scoped memory for tpu_custom_call.1']
    #allocation4 [shape = 's32[2]{0}', space=sflag, size = 0x8, scoped, tag = 'scoped memory for tpu_custom_call.1']
    #allocation5 [shape = 'u8[8192]{0}', space=vmem, size = 0x2000, scoped, tag = 'input window, operand 1, single buffered']
    #allocation6 [shape = 's32[1]{0}', space=sflag, size = 0x4, scoped, tag = 'scoped memory for tpu_custom_call.1']
    #allocation7 [shape = 'u8[32768]{0}', space=vmem, size = 0x8000, scoped, tag = 'output window, operand 0']
    %7 = vsyncpa [#allocation3], 0
    %s8 = scalar_lea.sflag [#allocation3], 1
    %9 = vsyncpa %s8, 0
    %10 = vsyncpa [#allocation6], 0
    %11 = vsyncpa [#allocation4], 0
    %s12 = scalar_lea.sflag [#allocation4], 1
    %13 = vsyncpa %s12, 0
    loop: start=0, step=1, limit=5
    $region2: #{tpu_custom_call.1} parent=1 // loop_pre_header
      _
    $region3: #{tpu_custom_call.1} parent=1 // loop_header
      %s15 = sphi 0, %s19
      %p16 = scmp.ge.s32.totalorder %s15, 5
      %s22 = sphi 0, %s34
      %s23 = sphi 0, %s30
      %s24 = sphi 0, %s22
      %s25 = sphi 0, %s23
      %s26 = sphi 0, %s24
      %s27 = sphi 0, %s25
      %s39 = sphi 0, %s41
      %s42 = sphi 0, %s39
      %s43 = sphi 0, %s42
      %s59 = sphi 0, %s43
      %s63 = sphi 0, %s63
      %s65 = sphi 0, %s63
      %s66 = sphi 0, %s65
      %s80 = sphi 0, %s66
      %s88 = sphi 0, %s90
      %s91 = sphi 0, %s88
      %s92 = sphi 0, %s91
      %s108 = sphi 0, %s92
    $region4: #{tpu_custom_call.1} parent=1 // loop_header_branch
      %18 = sbr.rel (%p16) target = $region8
    $region5: #{tpu_custom_call.1} parent=1 // loop_body
      %s20 = ssub.s32 %s15, 1
      %s21 = ssub.s32 %s15, 2
      %s28 = sadd.s32 1, %s23
      %p29 = scmp.ge.s32.totalorder %s28, 1
      %s30 = scalar_select %p29, 0, %s28
      %s31 = sadd.s32 1, %s22
      %s32 = scalar_select %p29, %s31, %s22
      %p33 = scmp.ge.s32.totalorder %s32, 3
      %s34 = scalar_select %p33, 0, %s32
      %s35 = ssub.s32 %s22, %s34
      %s36 = ssub.s32 %s23, %s30
      %s37 = sor.u32 %s35, %s36
      %p38 = scmp.eq.s32.totalorder %s37, 0
      %s40 = sadd.s32 %s39, 1
      %s41 = scalar_select %p38, %s39, %s40
      %p44 = pneg %p38
      %p45 = scmp.eq.s32.totalorder %s15, 2
      %p46 = por %p44, %p45
      %p47 = scmp.ne.s32.totalorder %s39, %s42
      %p48 = scmp.eq.s32.totalorder %s15, 0
      %p49 = por %p47, %p48
      %p50 = scmp.ne.s32.totalorder %s39, %s42
      %p51 = scmp.eq.s32.totalorder %s20, 2
      %p52 = por %p50, %p51
      %p53 = scmp.ne.s32.totalorder %s42, %s43
      %p54 = scmp.eq.s32.totalorder %s20, 0
      %p55 = por %p53, %p54
      %p56 = scmp.ne.s32.totalorder %s42, %s43
      %p57 = scmp.eq.s32.totalorder %s21, 2
      %p58 = por %p56, %p57
      %p60 = scmp.ne.s32.totalorder %s43, %s59
      %p61 = scmp.eq.s32.totalorder %s21, 0
      %p62 = por %p60, %p61
      %s64 = sadd.s32 %s63, 1
      %p67 = scmp.eq.s32.totalorder %s15, 2
      %p68 = scmp.ne.s32.totalorder %s63, %s65
      %p69 = scmp.eq.s32.totalorder %s15, 0
      %p70 = por %p68, %p69
      %p71 = scmp.ne.s32.totalorder %s63, %s65
      %p72 = scmp.eq.s32.totalorder %s20, 2
      %p73 = por %p71, %p72
      %p74 = scmp.ne.s32.totalorder %s65, %s66
      %p75 = scmp.eq.s32.totalorder %s20, 0
      %p76 = por %p74, %p75
      %p77 = scmp.ne.s32.totalorder %s65, %s66
      %p78 = scmp.eq.s32.totalorder %s21, 2
      %p79 = por %p77, %p78
      %p81 = scmp.ne.s32.totalorder %s66, %s80
      %p82 = scmp.eq.s32.totalorder %s21, 0
      %p83 = por %p81, %p82
      %s84 = ssub.s32 %s22, %s34
      %s85 = ssub.s32 %s23, %s30
      %s86 = sor.u32 %s84, %s85
      %p87 = scmp.eq.s32.totalorder %s86, 0
      %s89 = sadd.s32 %s88, 1
      %s90 = scalar_select %p87, %s88, %s89
      %p93 = pneg %p87
      %p94 = scmp.eq.s32.totalorder %s15, 2
      %p95 = por %p93, %p94
      %p96 = scmp.ne.s32.totalorder %s88, %s91
      %p97 = scmp.eq.s32.totalorder %s15, 0
      %p98 = por %p96, %p97
      %p99 = scmp.ne.s32.totalorder %s88, %s91
      %p100 = scmp.eq.s32.totalorder %s20, 2
      %p101 = por %p99, %p100
      %p102 = scmp.ne.s32.totalorder %s91, %s92
      %p103 = scmp.eq.s32.totalorder %s20, 0
      %p104 = por %p102, %p103
      %p105 = scmp.ne.s32.totalorder %s91, %s92
      %p106 = scmp.eq.s32.totalorder %s21, 2
      %p107 = por %p105, %p106
      %p109 = scmp.ne.s32.totalorder %s92, %s108
      %p110 = scmp.eq.s32.totalorder %s21, 0
      %p111 = por %p109, %p110
      %p112 = scmp.le.s32.totalorder 1, %s15
      %p113 = scmp.lt.s32.totalorder %s15, 4
      %p114 = pnand %p112, %p113
      %p115 = pneg %p114
      // Predicated region
      $region9: #{tpu_custom_call.1} parent=5 // pred_check
        _
      $region10: #{tpu_custom_call.1} parent=5 // pred_check_branch
        %117 = sbr.rel (%p114) target = $region12
      $region11: #{tpu_custom_call.1} parent=5 // pred_region
        %s118 = ssub.s32 %s15, 1
        // Predicated region
        $region13: #{tpu_custom_call.1} parent=11 // pred_check
          %p119 = pneg %p76
        $region14: #{tpu_custom_call.1} parent=11 // pred_check_branch
          %121 = sbr.rel (%p119) target = $region16
        $region15: #{tpu_custom_call.1} parent=11 // pred_region
          %s123 = ssub.s32 256, 256
          %124 = vsyncadd [#allocation6], %s123
          %s125 = sshll.u32 [#allocation5], 4
          %s126 = int_to_ptr.vmem [resolvable:$true] %s125
          %131 = dma.hbm_to_vmem [thread:$0]  %s1, 256, %s126, [#allocation6], 64, 64, 4
        $region16: #{tpu_custom_call.1} parent=11 // pred_fallthru
          _
      $region12: #{tpu_custom_call.1} parent=5 // pred_fallthru
        _
      %p132 = scmp.lt.s32.totalorder %s15, 3
      // Predicated region
      $region17: #{tpu_custom_call.1} parent=5 // pred_check
        %p133 = pneg %p132
      $region18: #{tpu_custom_call.1} parent=5 // pred_check_branch
        %135 = sbr.rel (%p133) target = $region20
      $region19: #{tpu_custom_call.1} parent=5 // pred_region
        // Predicated region
        $region21: #{tpu_custom_call.1} parent=19 // pred_check
          %p136 = pneg %p49
        $region22: #{tpu_custom_call.1} parent=19 // pred_check_branch
          %138 = sbr.rel (%p136) target = $region24
        $region23: #{tpu_custom_call.1} parent=19 // pred_region
          %s139 = sand.u32 %s39, 1
          %s140 = scalar_lea.sflag [#allocation3], %s139
          %s141 = sand.u32 %s39, 1
          %s142 = smul.addr %s141, 32
          %s143 = scalar_lea.vmem [#allocation2], %s142
          %s145 = ssub.s32 512, 512
          %146 = vsyncadd %s140, %s145
          %s147 = smul.addr %s22, 8
          %s148 = sadd.s32 %s23, %s147
          %s149 = smul.addr %s148, 64
          %s150 = scalar_lea.hbm %s0, %s149
          %s151 = sshll.u32 %s143, 4
          %s152 = int_to_ptr.vmem [resolvable:$true] %s151
          %157 = dma.hbm_to_vmem [thread:$0]  %s150, 512, %s152, %s140, 64, 64, 4
        $region24: #{tpu_custom_call.1} parent=19 // pred_fallthru
          _
      $region20: #{tpu_custom_call.1} parent=5 // pred_fallthru
        _
      %p158 = scmp.le.s32.totalorder 1, %s15
      %p159 = scmp.lt.s32.totalorder %s15, 4
      %p160 = pnand %p158, %p159
      %p161 = pneg %p160
      // Predicated region
      $region25: #{tpu_custom_call.1} parent=5 // pred_check
        _
      $region26: #{tpu_custom_call.1} parent=5 // pred_check_branch
        %163 = sbr.rel (%p160) target = $region28
      $region27: #{tpu_custom_call.1} parent=5 // pred_region
        %s164 = ssub.s32 %s15, 1
        %s165 = sand.u32 %s42, 1
        %s166 = scalar_lea.sflag [#allocation3], %s165
        %s167 = sand.u32 %s42, 1
        %s168 = smul.addr %s167, 32
        %s169 = scalar_lea.vmem [#allocation2], %s168
        // Predicated region
        $region29: #{tpu_custom_call.1} parent=27 // pred_check
          %p170 = pneg %p55
        $region30: #{tpu_custom_call.1} parent=27 // pred_check_branch
          %172 = sbr.rel (%p170) target = $region32
        $region31: #{tpu_custom_call.1} parent=27 // pred_region
          %173 = dma.done %s166, 512
        $region32: #{tpu_custom_call.1} parent=27 // pred_fallthru
          _
        // Predicated region
        $region33: #{tpu_custom_call.1} parent=27 // pred_check
          %p174 = pneg %p76
        $region34: #{tpu_custom_call.1} parent=27 // pred_check_branch
          %176 = sbr.rel (%p174) target = $region36
        $region35: #{tpu_custom_call.1} parent=27 // pred_region
          %177 = dma.done [#allocation6], 256
        $region36: #{tpu_custom_call.1} parent=27 // pred_fallthru
          _
        %s178 = sand.u32 %s42, 1
        %s179 = scalar_lea.sflag [#allocation3], %s178
        %s180 = sand.u32 %s42, 1
        %s181 = smul.addr %s180, 32
        %s182 = scalar_lea.vmem [#allocation2], %s181
        %p183 = pneg %p55
        %p184 = pneg %p52
        %p185 = pneg %p76
        %p186 = pneg %p73
        %p187 = pneg %p104
        %p188 = pneg %p101
        %s189 = sand.u32 %s91, 1
        %s190 = scalar_lea.sflag [#allocation4], %s189
        %s191 = sand.u32 %s91, 1
        %s192 = smul.addr %s191, 32
        %s193 = scalar_lea.vmem [#allocation7], %s192
        %v195 = vld [vmem:[%s169] sm:$0xf]
        %v196 = vld [vmem:[%s169 + $0x4] sm:$0xf]
        %v197 = vld [vmem:[%s169 + $0x8] sm:$0xf]
        %v198 = vld [vmem:[%s169 + $0xc] sm:$0xf]
        %v199 = vld [vmem:[%s169 + $0x10] sm:$0xf]
        %v200 = vld [vmem:[%s169 + $0x14] sm:$0xf]
        %v201 = vld [vmem:[%s169 + $0x18] sm:$0xf]
        %v202 = vld [vmem:[%s169 + $0x1c] sm:$0xf]
        %v203 = vld [vmem:[#allocation5] sm:$0xf]
        %v204 = vld [vmem:[#allocation5 + $0x4] sm:$0xf]
        %v205 = vld [vmem:[#allocation5 + $0x8] sm:$0xf]
        %v206 = vld [vmem:[#allocation5 + $0xc] sm:$0xf]
        %v215 = vunpack.c.l.b16 %v195
        %v216 = vunpack.c.l.b16 %v196
        %v217 = vunpack.c.l.b16 %v197
        %v218 = vunpack.c.l.b16 %v198
        %v219 = vunpack.c.l.b16 %v199
        %v220 = vunpack.c.l.b16 %v200
        %v221 = vunpack.c.l.b16 %v201
        %v222 = vunpack.c.l.b16 %v202
        %v223 = vpack.c.b16 %v216, %v215
        %v224 = vpack.c.b16 %v218, %v217
        %v225 = vpack.c.b16 %v220, %v219
        %v226 = vpack.c.b16 %v222, %v221
        %v231 = vunpack.c.l.b16 %v203
        %v232 = vunpack.c.l.b16 %v204
        %v233 = vunpack.c.l.b16 %v205
        %v234 = vunpack.c.l.b16 %v206
        %v235 = vpack.c.b16 %v232, %v231
        %v236 = vpack.c.b16 %v234, %v233
        %vm239 = vcmask 261120
        %v241 = vsel %vm239, %v223, 0
        %v244 = vsel %vm239, %v224, 0
        %v247 = vsel %vm239, %v225, 0
        %v250 = vsel %vm239, %v226, 0
        %252 = vmatprep.subr.bf16.mxu0 0
        %253 = vmatpush1.bf16.msra.mxu0 %v235
        %254 = vmatprep.subr.bf16.mxu0 0
        %255 = vmatpush1.bf16.msra.mxu0 %v236
        %256 = vmatprep.subr.bf16.mxu0 0
        %257 = vmatpush1.bf16.msra.mxu0 0
        %258 = vmatprep.subr.bf16.mxu0 0
        %259 = vmatpush1.bf16.msra.mxu0 0
        %260 = vmatprep.subr.bf16.mxu0 0
        %261 = vmatpush1.bf16.msra.mxu0 0
        %262 = vmatprep.subr.bf16.mxu0 0
        %263 = vmatpush1.bf16.msra.mxu0 0
        %264 = vmatprep.subr.bf16.mxu0 0
        %265 = vmatpush1.bf16.msra.mxu0 0
        %266 = vmatprep.subr.bf16.mxu0 0
        %267 = vmatpush1.bf16.msra.mxu0 0
        %268 = vmatprep.subr.bf16.mxu0 0
        %269 = vmatpush1.bf16.msra.mxu0 0
        %270 = vmatprep.subr.bf16.mxu0 0
        %271 = vmatpush1.bf16.msra.mxu0 0
        %272 = vmatprep.subr.bf16.mxu0 0
        %273 = vmatpush1.bf16.msra.mxu0 0
        %274 = vmatprep.subr.bf16.mxu0 0
        %275 = vmatpush1.bf16.msra.mxu0 0
        %276 = vmatprep.subr.bf16.mxu0 0
        %277 = vmatpush1.bf16.msra.mxu0 0
        %278 = vmatprep.subr.bf16.mxu0 0
        %279 = vmatpush1.bf16.msra.mxu0 0
        %280 = vmatprep.subr.bf16.mxu0 0
        %281 = vmatpush1.bf16.msra.mxu0 0
        %282 = vmatprep.subr.bf16.mxu0 0
        %283 = vmatpush1.bf16.msra.mxu0 0
        %284 = vmatprep.mubr.bf16.mxu0 0
        %285 = vmatmul.mubr.bf16.gmra.mrb[0].mxu0 %v241
        %v286 = vpop.f32.mrb[0].mxu0
        %v287 = vadd.f32 0.0, %v286
        %v288 = vpop.f32.mrb[0].mxu0
        %v289 = vpop.f32.mrb[0].mxu0
        %v290 = vadd.f32 0.0, %v289
        %v291 = vpop.f32.mrb[0].mxu0
        %292 = vmatprep.mubr.bf16.mxu0 0
        %293 = vmatmul.mubr.bf16.gmra.mrb[0].mxu0 %v244
        %v294 = vpop.f32.mrb[0].mxu0
        %v295 = vadd.f32 0.0, %v294
        %v296 = vpop.f32.mrb[0].mxu0
        %v297 = vpop.f32.mrb[0].mxu0
        %v298 = vadd.f32 0.0, %v297
        %v299 = vpop.f32.mrb[0].mxu0
        %300 = vmatprep.mubr.bf16.mxu0 0
        %301 = vmatmul.mubr.bf16.gmra.mrb[0].mxu0 %v247
        %v302 = vpop.f32.mrb[0].mxu0
        %v303 = vadd.f32 0.0, %v302
        %v304 = vpop.f32.mrb[0].mxu0
        %v305 = vpop.f32.mrb[0].mxu0
        %v306 = vadd.f32 0.0, %v305
        %v307 = vpop.f32.mrb[0].mxu0
        %308 = vmatprep.mubr.bf16.mxu0 0
        %309 = vmatmul.mubr.bf16.gmra.mrb[0].mxu0 %v250
        %v310 = vpop.f32.mrb[0].mxu0
        %v311 = vadd.f32 0.0, %v310
        %v312 = vpop.f32.mrb[0].mxu0
        %v313 = vpop.f32.mrb[0].mxu0
        %v314 = vadd.f32 0.0, %v313
        %v315 = vpop.f32.mrb[0].mxu0
        %316 = vdwg.mxu0
        %v317 = vpack.c.bf16 %v290, %v287
        %v318 = vpack.c.bf16 %v298, %v295
        %v319 = vpack.c.bf16 %v306, %v303
        %v320 = vpack.c.bf16 %v314, %v311
        %v325 = vunpack.c.l.b16 %v317
        %v326 = vunpack.c.h.b16 %v317
        %v327 = vunpack.c.l.b16 %v318
        %v328 = vunpack.c.h.b16 %v318
        %v329 = vunpack.c.l.b16 %v319
        %v330 = vunpack.c.h.b16 %v319
        %v331 = vunpack.c.l.b16 %v320
        %v332 = vunpack.c.h.b16 %v320
        %v333 = vpack.c.b16 %v325, %v325
        %v334 = vpack.c.b16 %v326, %v326
        %v335 = vpack.c.b16 %v327, %v327
        %v336 = vpack.c.b16 %v328, %v328
        %v337 = vpack.c.b16 %v329, %v329
        %v338 = vpack.c.b16 %v330, %v330
        %v339 = vpack.c.b16 %v331, %v331
        %v340 = vpack.c.b16 %v332, %v332
        %vm349 = vcmask 257024
        %350 = vst.msk [vmem:[%s193] sm:$0xf] %vm349, %v333
        %351 = vst.msk [vmem:[%s193 + $0x4] sm:$0xf] %vm349, %v334
        %352 = vst.msk [vmem:[%s193 + $0x8] sm:$0xf] %vm349, %v335
        %353 = vst.msk [vmem:[%s193 + $0xc] sm:$0xf] %vm349, %v336
        %354 = vst.msk [vmem:[%s193 + $0x10] sm:$0xf] %vm349, %v337
        %355 = vst.msk [vmem:[%s193 + $0x14] sm:$0xf] %vm349, %v338
        %356 = vst.msk [vmem:[%s193 + $0x18] sm:$0xf] %vm349, %v339
        %357 = vst.msk [vmem:[%s193 + $0x1c] sm:$0xf] %vm349, %v340
        %s358 = sand.u32 %s91, 1
        %s359 = scalar_lea.sflag [#allocation4], %s358
        %s360 = sand.u32 %s91, 1
        %s361 = smul.addr %s360, 32
        %s362 = scalar_lea.vmem [#allocation7], %s361
        // Predicated region
        $region37: #{tpu_custom_call.1} parent=27 // pred_check
          %p363 = pneg %p101
        $region38: #{tpu_custom_call.1} parent=27 // pred_check_branch
          %365 = sbr.rel (%p363) target = $region40
        $region39: #{tpu_custom_call.1} parent=27 // pred_region
          %s367 = ssub.s32 512, 512
          %368 = vsyncadd %s359, %s367
          %s369 = smul.addr %s24, 8
          %s370 = sadd.s32 %s25, %s369
          %s371 = smul.addr %s370, 64
          %s372 = scalar_lea.hbm %s2, %s371
          %s373 = sshll.u32 %s362, 4
          %s374 = int_to_ptr.vmem [resolvable:$true] %s373
          %379 = dma.vmem_to_hbm [thread:$0]  %s374, 512, %s372, %s359, 64, 64, 4
        $region40: #{tpu_custom_call.1} parent=27 // pred_fallthru
          _
      $region28: #{tpu_custom_call.1} parent=5 // pred_fallthru
        _
      %p380 = scmp.le.s32.totalorder 2, %s15
      // Predicated region
      $region41: #{tpu_custom_call.1} parent=5 // pred_check
        %p381 = pneg %p380
      $region42: #{tpu_custom_call.1} parent=5 // pred_check_branch
        %383 = sbr.rel (%p381) target = $region44
      $region43: #{tpu_custom_call.1} parent=5 // pred_region
        %s384 = ssub.s32 %s15, 2
        // Predicated region
        $region45: #{tpu_custom_call.1} parent=43 // pred_check
          %p385 = pneg %p107
        $region46: #{tpu_custom_call.1} parent=43 // pred_check_branch
          %387 = sbr.rel (%p385) target = $region48
        $region47: #{tpu_custom_call.1} parent=43 // pred_region
          %s388 = sand.u32 %s92, 1
          %s389 = scalar_lea.sflag [#allocation4], %s388
          %s390 = sand.u32 %s92, 1
          %s391 = smul.addr %s390, 32
          %s392 = scalar_lea.vmem [#allocation7], %s391
          %393 = dma.done %s389, 512
        $region48: #{tpu_custom_call.1} parent=43 // pred_fallthru
          _
      $region44: #{tpu_custom_call.1} parent=5 // pred_fallthru
        _
    $region6: #{tpu_custom_call.1} parent=1 // loop_footer
      %s19 = sadd.s32 1, %s15
    $region7: #{tpu_custom_call.1} parent=1 // loop_footer_branch
      %14 = sbr.rel target = $region3
    $region8: #{tpu_custom_call.1} parent=1 // loop_exit
      _
    %394 = vsyncpa [#allocation3], 1
    %s395 = scalar_lea.sflag [#allocation3], 1
    %396 = vsyncpa %s395, 1
    %397 = vsyncpa [#allocation6], 1
    %398 = vsyncpa [#allocation4], 1
    %s399 = scalar_lea.sflag [#allocation4], 1
    %400 = vsyncpa %s399, 1

</llo_original>
